<compile_context>
chip_gen: v7x
topology: tpu7x:2x2x1
jax: 0.10.0
libtpu: 0.0.40
codegen_flags: <defaults>
</compile_context>

<pallas_src>
import functools

import numpy as np
import jax
import jax.numpy as jnp
from jax.experimental import pallas as pl
from jax.experimental.pallas import tpu as pltpu


def _visual_loss_kernel(team_ref, in_puck_ref, in_goal_ref, tg_puck_ref, tg_goal_ref,
                        out_ref, *, threshold, half_width, width):
    """Refs: team_ref (SMEM, unused in body), four (TB, H, W) VMEM tiles, out (TB, 128)."""
    del team_ref  # goal-channel selection already happened in the index_map

    # Tent weights over W, built once per grid step (hoisted above all per-image work):
    # w[j] = b - |linspace(-b, b, W)[j]|
    col = jax.lax.broadcasted_iota(jnp.int32, (1, width), 1).astype(jnp.float32)
    xv = -half_width + col * (2.0 * half_width / (width - 1))
    w = half_width - jnp.abs(xv)                                   # (1, W)

    def reward(puck_ref, goal_ref):
        x0 = puck_ref[...].astype(jnp.float32)                     # (TB, H, W) — f32 math always
        g = goal_ref[...].astype(jnp.float32)                      # (TB, H, W)
        s = 0.5 * (jnp.tanh(0.5 * x0) + 1.0)                       # sigmoid via EUP tanh (exact)
        # sum(s*w) + sum(s*w*g) == sum(s*(1+g)*w): reduce H (sublane) first, then one short
        # (TB, W) lane reduce against the broadcast weight row — no full (TB,H,W)*w temporary.
        col_sw = jnp.sum(s * (1.0 + g), axis=1)                    # (TB, W)
        col_s = jnp.sum(s, axis=1)                                 # (TB, W)
        raw = jnp.sum(col_sw * w, axis=1, keepdims=True)           # (TB, 1)
        total = jnp.sum(col_s, axis=1, keepdims=True)              # (TB, 1)
        return jnp.where(total > threshold, jnp.zeros_like(raw), raw)

    ir = reward(in_puck_ref, in_goal_ref)    # frames BEFORE action
    tr = reward(tg_puck_ref, tg_goal_ref)    # frames AFTER action
    diff = ir - tr                                                  # (TB, 1), f32
    loss = jnp.where(diff != 0.0, diff, jnp.full_like(diff, -0.001))
    # Lane-dense unmasked store: replicate the per-image loss across 128 lanes; wrapper reads col 0.
    out_ref[...] = jnp.broadcast_to(loss, out_ref.shape)


def _choose_block_batch(B, requested):
    """Images per grid step: multiple of 8, <=16 by default (v7x VMEM-safe), >=2 steps if possible."""
    if requested is not None:
        tb = int(requested)
    else:
        tb = 16
        while tb > 8 and tb >= B:      # keep >= 2 grid steps so both v7x TensorCores get work
            tb //= 2
    tb = max(8, (tb // 8) * 8)         # multiple of 8 -> sublane-aligned (TB, 128) output block
    return tb


def visual_loss_batched(input_b3hw, target_b3hw, team_no, image_dims=(100, 130),
                        *, tile_b=None, ship_dtype=None, vmem_limit_bytes=None):
    """input_b3hw/target_b3hw: (B, 3, H, W) pre-sigmoid logits; team_no in {1, 2}.

    Returns a (B,) f32 vector of per-image-pair losses, each following the original
    (3,H,W)-path semantics of visual_loss.forward.

    ship_dtype=jnp.bfloat16 halves HBM traffic (recommended on v5e/v6e); all math stays in f32.
    """
    input_b3hw = jnp.asarray(input_b3hw)
    target_b3hw = jnp.asarray(target_b3hw)
    B, C, H, W = input_b3hw.shape
    assert target_b3hw.shape == (B, C, H, W)
    assert W >= 2

    if ship_dtype is not None:
        input_b3hw = input_b3hw.astype(ship_dtype)
        target_b3hw = target_b3hw.astype(ship_dtype)

    TB = _choose_block_batch(B, tile_b)
    Bp = ((B + TB - 1) // TB) * TB
    if Bp != B:
        pad = ((0, Bp - B), (0, 0), (0, 0), (0, 0))
        input_b3hw = jnp.pad(input_b3hw, pad)
        target_b3hw = jnp.pad(target_b3hw, pad)
    num_steps = Bp // TB

    threshold = (1.0 / 6.0) * image_dims[0] * image_dims[1]
    kernel = functools.partial(
        _visual_loss_kernel,
        threshold=float(threshold),
        half_width=float(W // 2),
        width=W,
    )

    # team_no selects the goal channel inside the index_map (scalar prefetch -> SMEM),
    # so this also works if team_no is a traced value.
    team = jnp.reshape(jnp.asarray(team_no, dtype=jnp.int32), (1,))

    puck_spec = pl.BlockSpec((TB, None, H, W), lambda b, t: (b, 0, 0, 0))
    goal_spec = pl.BlockSpec((TB, None, H, W), lambda b, t: (b, t[0], 0, 0))
    out_spec = pl.BlockSpec((TB, 128), lambda b, t: (b, 0))

    grid_spec = pltpu.PrefetchScalarGridSpec(
        num_scalar_prefetch=1,
        grid=(num_steps,),
        in_specs=[puck_spec, goal_spec, puck_spec, goal_spec],
        out_specs=out_spec,
    )

    itemsize = jnp.dtype(input_b3hw.dtype).itemsize
    cost = pl.CostEstimate(
        flops=int(2 * Bp * 8 * H * W),
        transcendentals=int(2 * Bp * H * W),
        bytes_accessed=int(4 * Bp * H * W * itemsize + Bp * 128 * 4),
    )

    cp_kwargs = dict(dimension_semantics=("parallel",))
    if vmem_limit_bytes is not None:
        cp_kwargs["vmem_limit_bytes"] = int(vmem_limit_bytes)

    out = pl.pallas_call(
        kernel,
        out_shape=jax.ShapeDtypeStruct((Bp, 128), jnp.float32),
        grid_spec=grid_spec,
        compiler_params=pltpu.CompilerParams(**cp_kwargs),
        cost_estimate=cost,
    )(team, input_b3hw, input_b3hw, target_b3hw, target_b3hw)
    return out[:B, 0]


def visual_loss(input_chw, target_chw, team_no, image_dims=(100, 130)):
    """Original (3, H, W) forward path: returns a scalar loss."""
    return visual_loss_batched(input_chw[None], target_chw[None], team_no, image_dims)[0]


def _reference_batched(inp, tgt, team_no, image_dims=(100, 130)):
    """Plain-JAX reference mirroring the PyTorch _get_reward / forward (3-D path) per image."""
    B, C, H, W = inp.shape
    b = W // 2
    w = np.array([x + b if x < 0 else -x + b for x in np.linspace(-b, b, W)],
                 dtype=np.float32)
    thr = (1.0 / 6.0) * image_dims[0] * image_dims[1]

    def rew(x):
        s = jax.nn.sigmoid(x[0])
        raw = jnp.sum(s * w) + jnp.sum(s * w * x[team_no])
        return jnp.where(jnp.sum(s) > thr, 0.0, raw)

    ir = jax.vmap(rew)(inp)
    tr = jax.vmap(rew)(tgt)
    d = ir - tr
    return jnp.where(d != 0.0, d, -0.001)


# TODO(synk): the 4-D batched branch of the original forward is not implemented -- it is broken
# in the source (uses `target_image - input[i]` as a statement and references undefined
# variables), so only the documented (3, H, W) path is kernelized (batched here over an added
# leading axis for throughput).


if __name__ == "__main__":
    key = jax.random.PRNGKey(0)
    k1, k2, k3, k4, k5 = jax.random.split(key, 5)

    # ---- Config 1: lane-friendly spatial size, f32 shipping, both team channels. ----
    B, C, H, W = 16, 3, 16, 128
    inp = jax.random.normal(k1, (B, C, H, W), dtype=jnp.float32)   # frames BEFORE action
    tgt = jax.random.normal(k2, (B, C, H, W), dtype=jnp.float32)   # frames AFTER action
    for team_no in (1, 2):
        out = jax.block_until_ready(visual_loss_batched(inp, tgt, team_no))
        ref = jax.block_until_ready(_reference_batched(inp, tgt, team_no))
        assert out.shape == (B,)
        assert np.allclose(np.asarray(out), np.asarray(ref), rtol=2e-3, atol=0.5), \
            (team_no, np.asarray(out), np.asarray(ref))

    # ---- Config 2: odd W (130-style lane padding), batch not a multiple of TB, bf16 shipping. ----
    B2, H2, W2 = 10, 12, 130
    inp2 = jax.random.normal(k3, (B2, C, H2, W2), dtype=jnp.float32)
    tgt2 = jax.random.normal(k4, (B2, C, H2, W2), dtype=jnp.float32)
    out_bf = jax.block_until_ready(
        visual_loss_batched(inp2, tgt2, 2, ship_dtype=jnp.bfloat16))
    ref_bf = jax.block_until_ready(
        _reference_batched(inp2.astype(jnp.bfloat16).astype(jnp.float32),
                           tgt2.astype(jnp.bfloat16).astype(jnp.float32), 2))
    assert np.allclose(np.asarray(out_bf), np.asarray(ref_bf), rtol=2e-3, atol=0.5), \
        (np.asarray(out_bf), np.asarray(ref_bf))

    # ---- Config 3: threshold gate fires (sum(sigmoid) > 100*130/6) -> both rewards 0 -> -0.001. ----
    B3, H3, W3 = 8, 24, 96
    inp3 = jax.random.normal(k5, (B3, C, H3, W3), dtype=jnp.float32)
    inp3 = inp3.at[:, 0].set(4.0)          # puck channel saturated -> gate triggers
    tgt3 = inp3
    out_gate = jax.block_until_ready(visual_loss_batched(inp3, tgt3, 1))
    ref_gate = jax.block_until_ready(_reference_batched(inp3, tgt3, 1))
    assert np.allclose(np.asarray(out_gate), np.full((B3,), -0.001), atol=1e-6)
    assert np.allclose(np.asarray(out_gate), np.asarray(ref_gate), atol=1e-6)

    # ---- Single-image (3, H, W) path, matching the original forward signature. ----
    loss0 = jax.block_until_ready(visual_loss(inp[0], tgt[0], 1))
    ref0 = _reference_batched(inp[:1], tgt[:1], 1)[0]
    assert np.allclose(np.asarray(loss0), np.asarray(ref0), rtol=2e-3, atol=0.5), (loss0, ref0)

    print("KERNEL_OK")
</pallas_src>

<mosaic_0001>
module attributes {stable_mosaic.version = 11 : i64} {
  func.func @_visual_loss_kernel(%arg0: i32, %arg1: memref<1xi32, #tpu.memory_space<smem>>, %arg2: memref<8x1x16x128xf32, #tpu.memory_space<vmem>>, %arg3: memref<8x1x16x128xf32, #tpu.memory_space<vmem>>, %arg4: memref<8x1x16x128xf32, #tpu.memory_space<vmem>>, %arg5: memref<8x1x16x128xf32, #tpu.memory_space<vmem>>, %arg6: memref<8x128xf32, #tpu.memory_space<vmem>>) attributes {dimension_semantics = [#tpu.dimension_semantics<parallel>], iteration_bounds = array<i64: 2>, scalar_prefetch = 1 : i64, scratch_operands = 0 : i64, tpu.core_type = #tpu.core_type<tc>, window_params = [{transform_indices = @transform_0, window_bounds = array<i64: 8, 1, 16, 128>}, {transform_indices = @transform_1, window_bounds = array<i64: 8, 1, 16, 128>}, {transform_indices = @transform_2, window_bounds = array<i64: 8, 1, 16, 128>}, {transform_indices = @transform_3, window_bounds = array<i64: 8, 1, 16, 128>}, {transform_indices = @transform_4, window_bounds = array<i64: 8, 128>}]} {
    %0 = tpu.iota {dimensions = array<i32: 1>} : vector<1x128xi32>
    %1 = arith.sitofp %0 : vector<1x128xi32> to vector<1x128xf32>
    %cst = arith.constant 1.00787401 : f32
    %2 = vector.broadcast %cst : f32 to vector<1x128xf32>
    %3 = arith.mulf %1, %2 : vector<1x128xf32>
    %cst_0 = arith.constant -6.400000e+01 : f32
    %4 = vector.broadcast %cst_0 : f32 to vector<1x128xf32>
    %5 = arith.addf %4, %3 : vector<1x128xf32>
    %6 = math.absf %5 : vector<1x128xf32>
    %cst_1 = arith.constant 6.400000e+01 : f32
    %7 = vector.broadcast %cst_1 : f32 to vector<1x128xf32>
    %8 = arith.subf %7, %6 : vector<1x128xf32>
    %c0 = arith.constant 0 : index
    %c0_2 = arith.constant 0 : index
    %c0_3 = arith.constant 0 : index
    %c0_4 = arith.constant 0 : index
    %9 = vector.load %arg2[%c0, %c0_2, %c0_3, %c0_4] : memref<8x1x16x128xf32, #tpu.memory_space<vmem>>, vector<8x1x16x128xf32>
    %10 = vector.shape_cast %9 : vector<8x1x16x128xf32> to vector<8x16x128xf32>
    %c0_5 = arith.constant 0 : index
    %c0_6 = arith.constant 0 : index
    %c0_7 = arith.constant 0 : index
    %c0_8 = arith.constant 0 : index
    %11 = vector.load %arg3[%c0_5, %c0_6, %c0_7, %c0_8] : memref<8x1x16x128xf32, #tpu.memory_space<vmem>>, vector<8x1x16x128xf32>
    %12 = vector.shape_cast %11 : vector<8x1x16x128xf32> to vector<8x16x128xf32>
    %cst_9 = arith.constant 5.000000e-01 : f32
    %13 = vector.broadcast %cst_9 : f32 to vector<8x16x128xf32>
    %14 = arith.mulf %13, %10 : vector<8x16x128xf32>
    %15 = math.tanh %14 : vector<8x16x128xf32>
    %cst_10 = arith.constant 1.000000e+00 : f32
    %16 = vector.broadcast %cst_10 : f32 to vector<8x16x128xf32>
    %17 = arith.addf %15, %16 : vector<8x16x128xf32>
    %cst_11 = arith.constant 5.000000e-01 : f32
    %18 = vector.broadcast %cst_11 : f32 to vector<8x16x128xf32>
    %19 = arith.mulf %18, %17 : vector<8x16x128xf32>
    %cst_12 = arith.constant 1.000000e+00 : f32
    %20 = vector.broadcast %cst_12 : f32 to vector<8x16x128xf32>
    %21 = arith.addf %20, %12 : vector<8x16x128xf32>
    %22 = arith.mulf %19, %21 : vector<8x16x128xf32>
    %cst_13 = arith.constant dense<0.000000e+00> : vector<8x128xf32>
    %23 = vector.multi_reduction <add>, %22, %cst_13 [1] : vector<8x16x128xf32> to vector<8x128xf32>
    %cst_14 = arith.constant dense<0.000000e+00> : vector<8x128xf32>
    %24 = vector.multi_reduction <add>, %19, %cst_14 [1] : vector<8x16x128xf32> to vector<8x128xf32>
    %25 = vector.broadcast %8 : vector<1x128xf32> to vector<8x128xf32>
    %26 = arith.mulf %23, %25 : vector<8x128xf32>
    %cst_15 = arith.constant dense<0.000000e+00> : vector<8xf32>
    %27 = vector.multi_reduction <add>, %26, %cst_15 [1] : vector<8x128xf32> to vector<8xf32>
    %28 = vector.shape_cast %27 : vector<8xf32> to vector<8x1xf32>
    %cst_16 = arith.constant dense<0.000000e+00> : vector<8xf32>
    %29 = vector.multi_reduction <add>, %24, %cst_16 [1] : vector<8x128xf32> to vector<8xf32>
    %30 = vector.shape_cast %29 : vector<8xf32> to vector<8x1xf32>
    %cst_17 = arith.constant 2166.66675 : f32
    %31 = vector.broadcast %cst_17 : f32 to vector<8x1xf32>
    %32 = arith.cmpf ogt, %30, %31 : vector<8x1xf32>
    %cst_18 = arith.constant 0.000000e+00 : f32
    %33 = vector.broadcast %cst_18 : f32 to vector<8x1xf32>
    %34 = arith.select %32, %33, %28 : vector<8x1xi1>, vector<8x1xf32>
    %c0_19 = arith.constant 0 : index
    %c0_20 = arith.constant 0 : index
    %c0_21 = arith.constant 0 : index
    %c0_22 = arith.constant 0 : index
    %35 = vector.load %arg4[%c0_19, %c0_20, %c0_21, %c0_22] : memref<8x1x16x128xf32, #tpu.memory_space<vmem>>, vector<8x1x16x128xf32>
    %36 = vector.shape_cast %35 : vector<8x1x16x128xf32> to vector<8x16x128xf32>
    %c0_23 = arith.constant 0 : index
    %c0_24 = arith.constant 0 : index
    %c0_25 = arith.constant 0 : index
    %c0_26 = arith.constant 0 : index
    %37 = vector.load %arg5[%c0_23, %c0_24, %c0_25, %c0_26] : memref<8x1x16x128xf32, #tpu.memory_space<vmem>>, vector<8x1x16x128xf32>
    %38 = vector.shape_cast %37 : vector<8x1x16x128xf32> to vector<8x16x128xf32>
    %cst_27 = arith.constant 5.000000e-01 : f32
    %39 = vector.broadcast %cst_27 : f32 to vector<8x16x128xf32>
    %40 = arith.mulf %39, %36 : vector<8x16x128xf32>
    %41 = math.tanh %40 : vector<8x16x128xf32>
    %cst_28 = arith.constant 1.000000e+00 : f32
    %42 = vector.broadcast %cst_28 : f32 to vector<8x16x128xf32>
    %43 = arith.addf %41, %42 : vector<8x16x128xf32>
    %cst_29 = arith.constant 5.000000e-01 : f32
    %44 = vector.broadcast %cst_29 : f32 to vector<8x16x128xf32>
    %45 = arith.mulf %44, %43 : vector<8x16x128xf32>
    %cst_30 = arith.constant 1.000000e+00 : f32
    %46 = vector.broadcast %cst_30 : f32 to vector<8x16x128xf32>
    %47 = arith.addf %46, %38 : vector<8x16x128xf32>
    %48 = arith.mulf %45, %47 : vector<8x16x128xf32>
    %cst_31 = arith.constant dense<0.000000e+00> : vector<8x128xf32>
    %49 = vector.multi_reduction <add>, %48, %cst_31 [1] : vector<8x16x128xf32> to vector<8x128xf32>
    %cst_32 = arith.constant dense<0.000000e+00> : vector<8x128xf32>
    %50 = vector.multi_reduction <add>, %45, %cst_32 [1] : vector<8x16x128xf32> to vector<8x128xf32>
    %51 = vector.broadcast %8 : vector<1x128xf32> to vector<8x128xf32>
    %52 = arith.mulf %49, %51 : vector<8x128xf32>
    %cst_33 = arith.constant dense<0.000000e+00> : vector<8xf32>
    %53 = vector.multi_reduction <add>, %52, %cst_33 [1] : vector<8x128xf32> to vector<8xf32>
    %54 = vector.shape_cast %53 : vector<8xf32> to vector<8x1xf32>
    %cst_34 = arith.constant dense<0.000000e+00> : vector<8xf32>
    %55 = vector.multi_reduction <add>, %50, %cst_34 [1] : vector<8x128xf32> to vector<8xf32>
    %56 = vector.shape_cast %55 : vector<8xf32> to vector<8x1xf32>
    %cst_35 = arith.constant 2166.66675 : f32
    %57 = vector.broadcast %cst_35 : f32 to vector<8x1xf32>
    %58 = arith.cmpf ogt, %56, %57 : vector<8x1xf32>
    %cst_36 = arith.constant 0.000000e+00 : f32
    %59 = vector.broadcast %cst_36 : f32 to vector<8x1xf32>
    %60 = arith.select %58, %59, %54 : vector<8x1xi1>, vector<8x1xf32>
    %61 = arith.subf %34, %60 : vector<8x1xf32>
    %cst_37 = arith.constant 0.000000e+00 : f32
    %62 = vector.broadcast %cst_37 : f32 to vector<8x1xf32>
    %63 = arith.cmpf one, %61, %62 : vector<8x1xf32>
    %cst_38 = arith.constant -1.000000e-03 : f32
    %64 = vector.broadcast %cst_38 : f32 to vector<8x1xf32>
    %65 = arith.select %63, %61, %64 : vector<8x1xi1>, vector<8x1xf32>
    %66 = vector.shape_cast %65 : vector<8x1xf32> to vector<8x1xf32>
    %67 = vector.broadcast %66 : vector<8x1xf32> to vector<8x128xf32>
    %c0_39 = arith.constant 0 : index
    %c0_40 = arith.constant 0 : index
    %68 = vector.load %arg6[%c0_39, %c0_40] : memref<8x128xf32, #tpu.memory_space<vmem>>, vector<8x128xf32>
    tpu.vector_store %arg6[%c0_39, %c0_40], %67 {strides = array<i32>} : memref<8x128xf32, #tpu.memory_space<vmem>>, vector<8x128xf32>,
    return
  }
  func.func @transform_0(%arg0: i32, %arg1: memref<1xi32, #tpu.memory_space<smem>>) -> (i32, i32, i32, i32) {
    %c0_i32 = arith.constant 0 : i32
    %c0_i32_0 = arith.constant 0 : i32
    %c0_i32_1 = arith.constant 0 : i32
    %c0_i32_2 = arith.constant 0 : i32
    return %arg0, %c0_i32, %c0_i32_0, %c0_i32_1 : i32, i32, i32, i32
  }
  func.func @transform_1(%arg0: i32, %arg1: memref<1xi32, #tpu.memory_space<smem>>) -> (i32, i32, i32, i32) {
    %c0 = arith.constant 0 : index
    %0 = memref.load %arg1[%c0] : memref<1xi32, #tpu.memory_space<smem>>
    %c0_i32 = arith.constant 0 : i32
    %c0_i32_0 = arith.constant 0 : i32
    %c0_i32_1 = arith.constant 0 : i32
    return %arg0, %0, %c0_i32, %c0_i32_0 : i32, i32, i32, i32
  }
  func.func @transform_2(%arg0: i32, %arg1: memref<1xi32, #tpu.memory_space<smem>>) -> (i32, i32, i32, i32) {
    %c0_i32 = arith.constant 0 : i32
    %c0_i32_0 = arith.constant 0 : i32
    %c0_i32_1 = arith.constant 0 : i32
    %c0_i32_2 = arith.constant 0 : i32
    return %arg0, %c0_i32, %c0_i32_0, %c0_i32_1 : i32, i32, i32, i32
  }
  func.func @transform_3(%arg0: i32, %arg1: memref<1xi32, #tpu.memory_space<smem>>) -> (i32, i32, i32, i32) {
    %c0 = arith.constant 0 : index
    %0 = memref.load %arg1[%c0] : memref<1xi32, #tpu.memory_space<smem>>
    %c0_i32 = arith.constant 0 : i32
    %c0_i32_0 = arith.constant 0 : i32
    %c0_i32_1 = arith.constant 0 : i32
    return %arg0, %0, %c0_i32, %c0_i32_0 : i32, i32, i32, i32
  }
  func.func @transform_4(%arg0: i32, %arg1: memref<1xi32, #tpu.memory_space<smem>>) -> (i32, i32) {
    %c0_i32 = arith.constant 0 : i32
    %c0_i32_0 = arith.constant 0 : i32
    return %arg0, %c0_i32 : i32, i32
  }
}

</mosaic_0001>

<llo_original>
// kernel: tpu_custom_call.1
$region0: #{tpu_custom_call.1}
  #allocation0 [shape = 'u32[]', space=smem, size = 0x4, offset = 0x4, fixed_abs, tag = 'smem constant byte address 0x4 - core index']
  #allocation1 [shape = 'u32[144,128]{1,0:T(1,128)}', space=vmem, size = 0x12000, scoped, tag = 'internal scratch']
  #allocation2 [shape = 's32[1]{0}', space=sflag, size = 0x4, scoped, tag = 'scoped memory for tpu_custom_call.1']
  #allocation3 [shape = 's32[1]{0:T(128)S(6)}', space=smem, size = 0x200, scoped, tag = 'prefetched SMEM operand 0']
  #allocation13 [shape = 's32[]', space=sflag, size = 0x4, offset = 0, fixed_abs, tag = 'sflag constant byte address 0x0 - dummy sync flag']
  #allocation15 [shape = 's32[]', space=sflag, size = 0x4, offset = 0, fixed_abs, tag = 'sflag constant byte address 0x0 - dummy sync flag']
  #allocation17 [shape = 's32[]', space=sflag, size = 0x4, offset = 0, fixed_abs, tag = 'sflag constant byte address 0x0 - dummy sync flag']
  #allocation19 [shape = 's32[]', space=sflag, size = 0x4, offset = 0, fixed_abs, tag = 'sflag constant byte address 0x0 - dummy sync flag']
  %s0 = inlined_call_operand.<no memory space> [shape: s32[1], index: 0, kind: input, shape index: {}]
  %s1 = inlined_call_operand.hbm [shape: f32[16,3,16,128], index: 1, kind: input, shape index: {}]
  %s2 = inlined_call_operand.hbm [shape: f32[16,3,16,128], index: 2, kind: input, shape index: {}]
  %s3 = inlined_call_operand.hbm [shape: f32[16,3,16,128], index: 3, kind: input, shape index: {}]
  %s4 = inlined_call_operand.hbm [shape: f32[16,3,16,128], index: 4, kind: input, shape index: {}]
  %s5 = inlined_call_operand.hbm [shape: f32[16,128], index: 5, kind: output, shape index: {}]
  %s6 = sld [smem:[#allocation0]]
  $region65: #{tpu_custom_call.1} parent=0
    _
  %s8 = ssub.s32 1, %s6
  %s9 = scalar_select 0, %s8, %s6
  %10 = sst [smem:[#allocation3]] %s0
  $region1: #{tpu_custom_call.1} parent=0
    #allocation4 [shape = 'u8[131072]{0}', space=vmem, size = 0x20000, scoped, tag = 'input window, operand 1']
    #allocation5 [shape = 's32[2]{0}', space=sflag, size = 0x8, scoped, tag = 'scoped memory for tpu_custom_call.1']
    #allocation6 [shape = 's32[2]{0}', space=sflag, size = 0x8, scoped, tag = 'scoped memory for tpu_custom_call.1']
    #allocation7 [shape = 'u8[131072]{0}', space=vmem, size = 0x20000, scoped, tag = 'input window, operand 2']
    #allocation8 [shape = 's32[2]{0}', space=sflag, size = 0x8, scoped, tag = 'scoped memory for tpu_custom_call.1']
    #allocation9 [shape = 'u8[131072]{0}', space=vmem, size = 0x20000, scoped, tag = 'input window, operand 3']
    #allocation10 [shape = 'u8[131072]{0}', space=vmem, size = 0x20000, scoped, tag = 'input window, operand 4']
    #allocation11 [shape = 's32[2]{0}', space=sflag, size = 0x8, scoped, tag = 'scoped memory for tpu_custom_call.1']
    #allocation12 [shape = 'u8[8192]{0}', space=vmem, size = 0x2000, scoped, tag = 'output window, operand 0']
    %11 = vsyncpa [#allocation5], 0
    %s12 = scalar_lea.sflag [#allocation5], 1
    %13 = vsyncpa %s12, 0
    %14 = vsyncpa [#allocation8], 0
    %s15 = scalar_lea.sflag [#allocation8], 1
    %16 = vsyncpa %s15, 0
    %17 = vsyncpa [#allocation11], 0
    %s18 = scalar_lea.sflag [#allocation11], 1
    %19 = vsyncpa %s18, 0
    %20 = vsyncpa [#allocation6], 0
    %s21 = scalar_lea.sflag [#allocation6], 1
    %22 = vsyncpa %s21, 0
    loop: start=0, step=1, limit=4
    $region2: #{tpu_custom_call.1} parent=1 // loop_pre_header
      _
    $region3: #{tpu_custom_call.1} parent=1 // loop_header
      %s24 = sphi 0, %s28
      %p25 = scmp.ge.s32.totalorder %s24, 4
      %s34 = sphi 0, %s36
      %s37 = sphi 0, %s34
      %s38 = sphi 0, %s37
      %s54 = sphi 0, %s38
      %s64 = sphi 0, %s66
      %s67 = sphi 0, %s64
      %s68 = sphi 0, %s67
      %s84 = sphi 0, %s68
      %s90 = sphi 0, %s92
      %s93 = sphi 0, %s90
      %s94 = sphi 0, %s93
      %s110 = sphi 0, %s94
      %s120 = sphi 0, %s122
      %s123 = sphi 0, %s120
      %s124 = sphi 0, %s123
      %s140 = sphi 0, %s124
      %s146 = sphi 0, %s148
      %s149 = sphi 0, %s146
      %s150 = sphi 0, %s149
      %s166 = sphi 0, %s150
    $region4: #{tpu_custom_call.1} parent=1 // loop_header_branch
      %27 = sbr.rel (%p25) target = $region8
    $region5: #{tpu_custom_call.1} parent=1 // loop_body
      %s29 = ssub.s32 %s24, 1
      %s30 = ssub.s32 %s24, 2
      %s31 = sadd.s32 %s24, 1
      %s32 = ssub.s32 %s24, %s31
      %p33 = scmp.eq.s32.totalorder %s32, 0
      %s35 = sadd.s32 %s34, 1
      %s36 = scalar_select %p33, %s34, %s35
      %p39 = pneg %p33
      %p40 = scmp.eq.s32.totalorder %s24, 1
      %p41 = por %p39, %p40
      %p42 = scmp.ne.s32.totalorder %s34, %s37
      %p43 = scmp.eq.s32.totalorder %s24, 0
      %p44 = por %p42, %p43
      %p45 = scmp.ne.s32.totalorder %s34, %s37
      %p46 = scmp.eq.s32.totalorder %s29, 1
      %p47 = por %p45, %p46
      %p48 = scmp.ne.s32.totalorder %s37, %s38
      %p49 = scmp.eq.s32.totalorder %s29, 0
      %p50 = por %p48, %p49
      %p51 = scmp.ne.s32.totalorder %s37, %s38
      %p52 = scmp.eq.s32.totalorder %s30, 1
      %p53 = por %p51, %p52
      %p55 = scmp.ne.s32.totalorder %s38, %s54
      %p56 = scmp.eq.s32.totalorder %s30, 0
      %p57 = por %p55, %p56
      %s58 = sld [smem:[#allocation3]]
      %s59 = sld [smem:[#allocation3]]
      %s60 = ssub.s32 %s24, %s31
      %s61 = ssub.s32 %s58, %s59
      %s62 = sor.u32 %s60, %s61
      %p63 = scmp.eq.s32.totalorder %s62, 0
      %s65 = sadd.s32 %s64, 1
      %s66 = scalar_select %p63, %s64, %s65
      %p69 = pneg %p63
      %p70 = scmp.eq.s32.totalorder %s24, 1
      %p71 = por %p69, %p70
      %p72 = scmp.ne.s32.totalorder %s64, %s67
      %p73 = scmp.eq.s32.totalorder %s24, 0
      %p74 = por %p72, %p73
      %p75 = scmp.ne.s32.totalorder %s64, %s67
      %p76 = scmp.eq.s32.totalorder %s29, 1
      %p77 = por %p75, %p76
      %p78 = scmp.ne.s32.totalorder %s67, %s68
      %p79 = scmp.eq.s32.totalorder %s29, 0
      %p80 = por %p78, %p79
      %p81 = scmp.ne.s32.totalorder %s67, %s68
      %p82 = scmp.eq.s32.totalorder %s30, 1
      %p83 = por %p81, %p82
      %p85 = scmp.ne.s32.totalorder %s68, %s84
      %p86 = scmp.eq.s32.totalorder %s30, 0
      %p87 = por %p85, %p86
      %s88 = ssub.s32 %s24, %s31
      %p89 = scmp.eq.s32.totalorder %s88, 0
      %s91 = sadd.s32 %s90, 1
      %s92 = scalar_select %p89, %s90, %s91
      %p95 = pneg %p89
      %p96 = scmp.eq.s32.totalorder %s24, 1
      %p97 = por %p95, %p96
      %p98 = scmp.ne.s32.totalorder %s90, %s93
      %p99 = scmp.eq.s32.totalorder %s24, 0
      %p100 = por %p98, %p99
      %p101 = scmp.ne.s32.totalorder %s90, %s93
      %p102 = scmp.eq.s32.totalorder %s29, 1
      %p103 = por %p101, %p102
      %p104 = scmp.ne.s32.totalorder %s93, %s94
      %p105 = scmp.eq.s32.totalorder %s29, 0
      %p106 = por %p104, %p105
      %p107 = scmp.ne.s32.totalorder %s93, %s94
      %p108 = scmp.eq.s32.totalorder %s30, 1
      %p109 = por %p107, %p108
      %p111 = scmp.ne.s32.totalorder %s94, %s110
      %p112 = scmp.eq.s32.totalorder %s30, 0
      %p113 = por %p111, %p112
      %s114 = sld [smem:[#allocation3]]
      %s115 = sld [smem:[#allocation3]]
      %s116 = ssub.s32 %s24, %s31
      %s117 = ssub.s32 %s114, %s115
      %s118 = sor.u32 %s116, %s117
      %p119 = scmp.eq.s32.totalorder %s118, 0
      %s121 = sadd.s32 %s120, 1
      %s122 = scalar_select %p119, %s120, %s121
      %p125 = pneg %p119
      %p126 = scmp.eq.s32.totalorder %s24, 1
      %p127 = por %p125, %p126
      %p128 = scmp.ne.s32.totalorder %s120, %s123
      %p129 = scmp.eq.s32.totalorder %s24, 0
      %p130 = por %p128, %p129
      %p131 = scmp.ne.s32.totalorder %s120, %s123
      %p132 = scmp.eq.s32.totalorder %s29, 1
      %p133 = por %p131, %p132
      %p134 = scmp.ne.s32.totalorder %s123, %s124
      %p135 = scmp.eq.s32.totalorder %s29, 0
      %p136 = por %p134, %p135
      %p137 = scmp.ne.s32.totalorder %s123, %s124
      %p138 = scmp.eq.s32.totalorder %s30, 1
      %p139 = por %p137, %p138
      %p141 = scmp.ne.s32.totalorder %s124, %s140
      %p142 = scmp.eq.s32.totalorder %s30, 0
      %p143 = por %p141, %p142
      %s144 = ssub.s32 %s24, %s31
      %p145 = scmp.eq.s32.totalorder %s144, 0
      %s147 = sadd.s32 %s146, 1
      %s148 = scalar_select %p145, %s146, %s147
      %p151 = pneg %p145
      %p152 = scmp.eq.s32.totalorder %s24, 1
      %p153 = por %p151, %p152
      %p154 = scmp.ne.s32.totalorder %s146, %s149
      %p155 = scmp.eq.s32.totalorder %s24, 0
      %p156 = por %p154, %p155
      %p157 = scmp.ne.s32.totalorder %s146, %s149
      %p158 = scmp.eq.s32.totalorder %s29, 1
      %p159 = por %p157, %p158
      %p160 = scmp.ne.s32.totalorder %s149, %s150
      %p161 = scmp.eq.s32.totalorder %s29, 0
      %p162 = por %p160, %p161
      %p163 = scmp.ne.s32.totalorder %s149, %s150
      %p164 = scmp.eq.s32.totalorder %s30, 1
      %p165 = por %p163, %p164
      %p167 = scmp.ne.s32.totalorder %s150, %s166
      %p168 = scmp.eq.s32.totalorder %s30, 0
      %p169 = por %p167, %p168
      %p170 = scmp.le.s32.totalorder 1, %s24
      %p171 = scmp.lt.s32.totalorder %s24, 3
      %p172 = pnand %p170, %p171
      %p173 = pneg %p172
      // Predicated region
      $region9: #{tpu_custom_call.1} parent=5 // pred_check
        _
      $region10: #{tpu_custom_call.1} parent=5 // pred_check_branch
        %175 = sbr.rel (%p172) target = $region12
      $region11: #{tpu_custom_call.1} parent=5 // pred_region
        %s176 = ssub.s32 %s24, 1
      $region12: #{tpu_custom_call.1} parent=5 // pred_fallthru
        _
      %p177 = scmp.lt.s32.totalorder %s24, 2
      // Predicated region
      $region13: #{tpu_custom_call.1} parent=5 // pred_check
        %p178 = pneg %p177
      $region14: #{tpu_custom_call.1} parent=5 // pred_check_branch
        %180 = sbr.rel (%p178) target = $region16
      $region15: #{tpu_custom_call.1} parent=5 // pred_region
        // Predicated region
        $region17: #{tpu_custom_call.1} parent=15 // pred_check
          %p181 = pneg %p44
        $region18: #{tpu_custom_call.1} parent=15 // pred_check_branch
          %183 = sbr.rel (%p181) target = $region20
        $region19: #{tpu_custom_call.1} parent=15 // pred_region
          #allocation14 [shape = 'u32[6]{0}', space=smem, size = 0x18, scoped, tag = 'DMA stride descriptor']
          %s184 = sand.u32 %s34, 1
          %s185 = scalar_lea.sflag [#allocation5], %s184
          %s186 = sand.u32 %s34, 1
          %s187 = smul.addr %s186, 128
          %s188 = scalar_lea.vmem [#allocation4], %s187
          %s189 = smul.u32 8, %s24
          %s191 = ssub.s32 2048, 2048
          %192 = vsyncadd %s185, %s191
          %s193 = smul.addr %s189, 6
          %s194 = smul.addr %s193, 128
          %s195 = scalar_lea.hbm %s1, %s194
          %s197 = sshll.u32 1, 14
          %s198 = sxor.u32 4294967295, %s197
          %s200 = sld [smem:[#allocation0]]
          %s201 = sadd.s32 2, %s200
          %s203 = sshll.u32 7, 26
          %s204 = sxor.u32 4294967295, %s203
          %s205 = sand.u32 0, %s204
          %s206 = sshll.u32 %s201, 26
          %s207 = sor.u32 %s205, %s206
          %s208 = sshll.u32 %s188, 4
          %s209 = int_to_ptr.vmem [resolvable:$true] %s208
          %215 = sst [smem:[#allocation14]] 768
          %s216 = scalar_lea.smem [#allocation14], 1
          %217 = sst [smem:[%s216]] 256
          %s218 = scalar_lea.smem [#allocation14], 2
          %219 = sst [smem:[%s218]] 2
          %s220 = scalar_lea.smem [#allocation14], 3
          %221 = sst [smem:[%s220]] 128
          %s222 = scalar_lea.smem [#allocation14], 4
          %223 = sst [smem:[%s222]] 128
          %s224 = scalar_lea.smem [#allocation14], 5
          %225 = sst [smem:[%s224]] 8
          %227 = dma.general %s195, 2048, %s209, %s185, [#allocation13], [#allocation14], %s207, 0
        $region20: #{tpu_custom_call.1} parent=15 // pred_fallthru
          _
        // Predicated region
        $region21: #{tpu_custom_call.1} parent=15 // pred_check
          %p228 = pneg %p74
        $region22: #{tpu_custom_call.1} parent=15 // pred_check_branch
          %230 = sbr.rel (%p228) target = $region24
        $region23: #{tpu_custom_call.1} parent=15 // pred_region
          #allocation16 [shape = 'u32[6]{0}', space=smem, size = 0x18, scoped, tag = 'DMA stride descriptor']
          %s231 = sand.u32 %s24, 1
          %s232 = scalar_lea.sflag [#allocation8], %s231
          %s233 = sand.u32 %s64, 1
          %s234 = smul.addr %s233, 128
          %s235 = scalar_lea.vmem [#allocation7], %s234
          %s236 = sld [smem:[#allocation3]]
          %s237 = smul.u32 8, %s24
          %s239 = ssub.s32 2048, 2048
          %240 = vsyncadd %s232, %s239
          %s241 = smul.addr %s236, 2
          %s242 = smul.addr %s237, 6
          %s243 = sadd.s32 %s241, %s242
          %s244 = smul.addr %s243, 128
          %s245 = scalar_lea.hbm %s2, %s244
          %s247 = sshll.u32 1, 14
          %s248 = sxor.u32 4294967295, %s247
          %s250 = sld [smem:[#allocation0]]
          %s251 = sadd.s32 2, %s250
          %s253 = sshll.u32 7, 26
          %s254 = sxor.u32 4294967295, %s253
          %s255 = sand.u32 0, %s254
          %s256 = sshll.u32 %s251, 26
          %s257 = sor.u32 %s255, %s256
          %s258 = sshll.u32 %s235, 4
          %s259 = int_to_ptr.vmem [resolvable:$true] %s258
          %265 = sst [smem:[#allocation16]] 768
          %s266 = scalar_lea.smem [#allocation16], 1
          %267 = sst [smem:[%s266]] 256
          %s268 = scalar_lea.smem [#allocation16], 2
          %269 = sst [smem:[%s268]] 2
          %s270 = scalar_lea.smem [#allocation16], 3
          %271 = sst [smem:[%s270]] 128
          %s272 = scalar_lea.smem [#allocation16], 4
          %273 = sst [smem:[%s272]] 128
          %s274 = scalar_lea.smem [#allocation16], 5
          %275 = sst [smem:[%s274]] 8
          %277 = dma.general %s245, 2048, %s259, %s232, [#allocation15], [#allocation16], %s257, 0
        $region24: #{tpu_custom_call.1} parent=15 // pred_fallthru
          _
        // Predicated region
        $region25: #{tpu_custom_call.1} parent=15 // pred_check
          %p278 = pneg %p100
        $region26: #{tpu_custom_call.1} parent=15 // pred_check_branch
          %280 = sbr.rel (%p278) target = $region28
        $region27: #{tpu_custom_call.1} parent=15 // pred_region
          #allocation18 [shape = 'u32[6]{0}', space=smem, size = 0x18, scoped, tag = 'DMA stride descriptor']
          %s281 = sand.u32 %s24, 1
          %s282 = scalar_lea.sflag [#allocation8], %s281
          %s283 = sand.u32 %s90, 1
          %s284 = smul.addr %s283, 128
          %s285 = scalar_lea.vmem [#allocation9], %s284
          %s286 = smul.u32 8, %s24
          %s288 = ssub.s32 2048, 2048
          %289 = vsyncadd %s282, %s288
          %s290 = smul.addr %s286, 6
          %s291 = smul.addr %s290, 128
          %s292 = scalar_lea.hbm %s3, %s291
          %s294 = sshll.u32 1, 14
          %s295 = sxor.u32 4294967295, %s294
          %s297 = sld [smem:[#allocation0]]
          %s298 = sadd.s32 2, %s297
          %s300 = sshll.u32 7, 26
          %s301 = sxor.u32 4294967295, %s300
          %s302 = sand.u32 0, %s301
          %s303 = sshll.u32 %s298, 26
          %s304 = sor.u32 %s302, %s303
          %s305 = sshll.u32 %s285, 4
          %s306 = int_to_ptr.vmem [resolvable:$true] %s305
          %312 = sst [smem:[#allocation18]] 768
          %s313 = scalar_lea.smem [#allocation18], 1
          %314 = sst [smem:[%s313]] 256
          %s315 = scalar_lea.smem [#allocation18], 2
          %316 = sst [smem:[%s315]] 2
          %s317 = scalar_lea.smem [#allocation18], 3
          %318 = sst [smem:[%s317]] 128
          %s319 = scalar_lea.smem [#allocation18], 4
          %320 = sst [smem:[%s319]] 128
          %s321 = scalar_lea.smem [#allocation18], 5
          %322 = sst [smem:[%s321]] 8
          %324 = dma.general %s292, 2048, %s306, %s282, [#allocation17], [#allocation18], %s304, 0
        $region28: #{tpu_custom_call.1} parent=15 // pred_fallthru
          _
        // Predicated region
        $region29: #{tpu_custom_call.1} parent=15 // pred_check
          %p325 = pneg %p130
        $region30: #{tpu_custom_call.1} parent=15 // pred_check_branch
          %327 = sbr.rel (%p325) target = $region32
        $region31: #{tpu_custom_call.1} parent=15 // pred_region
          #allocation20 [shape = 'u32[6]{0}', space=smem, size = 0x18, scoped, tag = 'DMA stride descriptor']
          %s328 = sand.u32 %s120, 1
          %s329 = scalar_lea.sflag [#allocation11], %s328
          %s330 = sand.u32 %s120, 1
          %s331 = smul.addr %s330, 128
          %s332 = scalar_lea.vmem [#allocation10], %s331
          %s333 = sld [smem:[#allocation3]]
          %s334 = smul.u32 8, %s24
          %s336 = ssub.s32 2048, 2048
          %337 = vsyncadd %s329, %s336
          %s338 = smul.addr %s333, 2
          %s339 = smul.addr %s334, 6
          %s340 = sadd.s32 %s338, %s339
          %s341 = smul.addr %s340, 128
          %s342 = scalar_lea.hbm %s4, %s341
          %s344 = sshll.u32 1, 14
          %s345 = sxor.u32 4294967295, %s344
          %s347 = sld [smem:[#allocation0]]
          %s348 = sadd.s32 2, %s347
          %s350 = sshll.u32 7, 26
          %s351 = sxor.u32 4294967295, %s350
          %s352 = sand.u32 0, %s351
          %s353 = sshll.u32 %s348, 26
          %s354 = sor.u32 %s352, %s353
          %s355 = sshll.u32 %s332, 4
          %s356 = int_to_ptr.vmem [resolvable:$true] %s355
          %362 = sst [smem:[#allocation20]] 768
          %s363 = scalar_lea.smem [#allocation20], 1
          %364 = sst [smem:[%s363]] 256
          %s365 = scalar_lea.smem [#allocation20], 2
          %366 = sst [smem:[%s365]] 2
          %s367 = scalar_lea.smem [#allocation20], 3
          %368 = sst [smem:[%s367]] 128
          %s369 = scalar_lea.smem [#allocation20], 4
          %370 = sst [smem:[%s369]] 128
          %s371 = scalar_lea.smem [#allocation20], 5
          %372 = sst [smem:[%s371]] 8
          %374 = dma.general %s342, 2048, %s356, %s329, [#allocation19], [#allocation20], %s354, 0
        $region32: #{tpu_custom_call.1} parent=15 // pred_fallthru
          _
      $region16: #{tpu_custom_call.1} parent=5 // pred_fallthru
        _
      %p375 = scmp.le.s32.totalorder 1, %s24
      %p376 = scmp.lt.s32.totalorder %s24, 3
      %p377 = pnand %p375, %p376
      %p378 = pneg %p377
      // Predicated region
      $region33: #{tpu_custom_call.1} parent=5 // pred_check
        _
      $region34: #{tpu_custom_call.1} parent=5 // pred_check_branch
        %380 = sbr.rel (%p377) target = $region36
      $region35: #{tpu_custom_call.1} parent=5 // pred_region
        %s381 = ssub.s32 %s24, 1
        %s382 = sand.u32 %s37, 1
        %s383 = scalar_lea.sflag [#allocation5], %s382
        %s384 = sand.u32 %s37, 1
        %s385 = smul.addr %s384, 128
        %s386 = scalar_lea.vmem [#allocation4], %s385
        // Predicated region
        $region37: #{tpu_custom_call.1} parent=35 // pred_check
          %p387 = pneg %p50
        $region38: #{tpu_custom_call.1} parent=35 // pred_check_branch
          %389 = sbr.rel (%p387) target = $region40
        $region39: #{tpu_custom_call.1} parent=35 // pred_region
          %390 = dma.done %s383, 2048
        $region40: #{tpu_custom_call.1} parent=35 // pred_fallthru
          _
        %s391 = sand.u32 %s29, 1
        %s392 = scalar_lea.sflag [#allocation8], %s391
        %s393 = sand.u32 %s67, 1
        %s394 = smul.addr %s393, 128
        %s395 = scalar_lea.vmem [#allocation7], %s394
        // Predicated region
        $region41: #{tpu_custom_call.1} parent=35 // pred_check
          %p396 = pneg %p80
        $region42: #{tpu_custom_call.1} parent=35 // pred_check_branch
          %398 = sbr.rel (%p396) target = $region44
        $region43: #{tpu_custom_call.1} parent=35 // pred_region
          %399 = dma.done %s392, 2048
        $region44: #{tpu_custom_call.1} parent=35 // pred_fallthru
          _
        %s400 = sand.u32 %s29, 1
        %s401 = scalar_lea.sflag [#allocation8], %s400
        %s402 = sand.u32 %s93, 1
        %s403 = smul.addr %s402, 128
        %s404 = scalar_lea.vmem [#allocation9], %s403
        // Predicated region
        $region45: #{tpu_custom_call.1} parent=35 // pred_check
          %p405 = pneg %p106
        $region46: #{tpu_custom_call.1} parent=35 // pred_check_branch
          %407 = sbr.rel (%p405) target = $region48
        $region47: #{tpu_custom_call.1} parent=35 // pred_region
          %408 = dma.done %s401, 2048
        $region48: #{tpu_custom_call.1} parent=35 // pred_fallthru
          _
        %s409 = sand.u32 %s123, 1
        %s410 = scalar_lea.sflag [#allocation11], %s409
        %s411 = sand.u32 %s123, 1
        %s412 = smul.addr %s411, 128
        %s413 = scalar_lea.vmem [#allocation10], %s412
        // Predicated region
        $region49: #{tpu_custom_call.1} parent=35 // pred_check
          %p414 = pneg %p136
        $region50: #{tpu_custom_call.1} parent=35 // pred_check_branch
          %416 = sbr.rel (%p414) target = $region52
        $region51: #{tpu_custom_call.1} parent=35 // pred_region
          %417 = dma.done %s410, 2048
        $region52: #{tpu_custom_call.1} parent=35 // pred_fallthru
          _
        %s418 = sand.u32 %s37, 1
        %s419 = scalar_lea.sflag [#allocation5], %s418
        %s420 = sand.u32 %s37, 1
        %s421 = smul.addr %s420, 128
        %s422 = scalar_lea.vmem [#allocation4], %s421
        %p423 = pneg %p50
        %p424 = pneg %p47
        %s425 = sand.u32 %s29, 1
        %s426 = scalar_lea.sflag [#allocation8], %s425
        %s427 = sand.u32 %s67, 1
        %s428 = smul.addr %s427, 128
        %s429 = scalar_lea.vmem [#allocation7], %s428
        %p430 = pneg %p80
        %p431 = pneg %p77
        %s432 = sand.u32 %s29, 1
        %s433 = scalar_lea.sflag [#allocation8], %s432
        %s434 = sand.u32 %s93, 1
        %s435 = smul.addr %s434, 128
        %s436 = scalar_lea.vmem [#allocation9], %s435
        %p437 = pneg %p106
        %p438 = pneg %p103
        %s439 = sand.u32 %s123, 1
        %s440 = scalar_lea.sflag [#allocation11], %s439
        %s441 = sand.u32 %s123, 1
        %s442 = smul.addr %s441, 128
        %s443 = scalar_lea.vmem [#allocation10], %s442
        %p444 = pneg %p136
        %p445 = pneg %p133
        %p446 = pneg %p162
        %p447 = pneg %p159
        %s448 = sand.u32 %s149, 1
        %s449 = scalar_lea.sflag [#allocation6], %s448
        %s450 = sand.u32 %s149, 1
        %s451 = smul.addr %s450, 8
        %s452 = scalar_lea.vmem [#allocation12], %s451
        %s453 = smul.u32 8, %s29
        %s454 = sld [smem:[#allocation3]]
        %s455 = smul.u32 8, %s29
        %s456 = smul.u32 8, %s29
        %s457 = sld [smem:[#allocation3]]
        %s458 = smul.u32 8, %s29
        %v459 = vlaneseq
        %v460 = vand.u32 %v459, 127
        %v461 = vcvt.s32.f32 %v460
        %v462 = vmul.f32 %v461, 1.007874
        %v463 = vadd.f32 %v462, -64.0
        %v464 = vand.u32 2147483647, %v463
        %v465 = vsub.f32 64.0, %v464
        %v466 = vld [vmem:[%s386] sm:$0xff]
        %v467 = vld [vmem:[%s386 + $0x8] sm:$0xff]
        %v468 = vld [vmem:[%s386 + $0x10] sm:$0xff]
        %v469 = vld [vmem:[%s386 + $0x18] sm:$0xff]
        %v470 = vld [vmem:[%s386 + $0x20] sm:$0xff]
        %v471 = vld [vmem:[%s386 + $0x28] sm:$0xff]
        %v472 = vld [vmem:[%s386 + $0x30] sm:$0xff]
        %v473 = vld [vmem:[%s386 + $0x38] sm:$0xff]
        %v474 = vld [vmem:[%s386 + $0x40] sm:$0xff]
        %v475 = vld [vmem:[%s386 + $0x48] sm:$0xff]
        %v476 = vld [vmem:[%s386 + $0x50] sm:$0xff]
        %v477 = vld [vmem:[%s386 + $0x58] sm:$0xff]
        %v478 = vld [vmem:[%s386 + $0x60] sm:$0xff]
        %v479 = vld [vmem:[%s386 + $0x68] sm:$0xff]
        %v480 = vld [vmem:[%s386 + $0x70] sm:$0xff]
        %v481 = vld [vmem:[%s386 + $0x78] sm:$0xff]
        %v482 = vld [vmem:[%s395] sm:$0xff]
        %v483 = vld [vmem:[%s395 + $0x8] sm:$0xff]
        %v484 = vld [vmem:[%s395 + $0x10] sm:$0xff]
        %v485 = vld [vmem:[%s395 + $0x18] sm:$0xff]
        %v486 = vld [vmem:[%s395 + $0x20] sm:$0xff]
        %v487 = vld [vmem:[%s395 + $0x28] sm:$0xff]
        %v488 = vld [vmem:[%s395 + $0x30] sm:$0xff]
        %v489 = vld [vmem:[%s395 + $0x38] sm:$0xff]
        %v490 = vld [vmem:[%s395 + $0x40] sm:$0xff]
        %v491 = vld [vmem:[%s395 + $0x48] sm:$0xff]
        %v492 = vld [vmem:[%s395 + $0x50] sm:$0xff]
        %v493 = vld [vmem:[%s395 + $0x58] sm:$0xff]
        %v494 = vld [vmem:[%s395 + $0x60] sm:$0xff]
        %v495 = vld [vmem:[%s395 + $0x68] sm:$0xff]
        %v496 = vld [vmem:[%s395 + $0x70] sm:$0xff]
        %v497 = vld [vmem:[%s395 + $0x78] sm:$0xff]
        %v498 = vmul.f32 %v466, 0.5
        %v499 = vmul.f32 %v467, 0.5
        %v500 = vmul.f32 %v468, 0.5
        %v501 = vmul.f32 %v469, 0.5
        %v502 = vmul.f32 %v470, 0.5
        %v503 = vmul.f32 %v471, 0.5
        %v504 = vmul.f32 %v472, 0.5
        %v505 = vmul.f32 %v473, 0.5
        %v506 = vmul.f32 %v474, 0.5
        %v507 = vmul.f32 %v475, 0.5
        %v508 = vmul.f32 %v476, 0.5
        %v509 = vmul.f32 %v477, 0.5
        %v510 = vmul.f32 %v478, 0.5
        %v511 = vmul.f32 %v479, 0.5
        %v512 = vmul.f32 %v480, 0.5
        %v513 = vmul.f32 %v481, 0.5
        %v514 = vtanh.pop %v498
        %v515 = vtanh.pop %v499
        %v516 = vtanh.pop %v500
        %v517 = vtanh.pop %v501
        %v518 = vtanh.pop %v502
        %v519 = vtanh.pop %v503
        %v520 = vtanh.pop %v504
        %v521 = vtanh.pop %v505
        %v522 = vtanh.pop %v506
        %v523 = vtanh.pop %v507
        %v524 = vtanh.pop %v508
        %v525 = vtanh.pop %v509
        %v526 = vtanh.pop %v510
        %v527 = vtanh.pop %v511
        %v528 = vtanh.pop %v512
        %v529 = vtanh.pop %v513
        %v530 = vadd.f32 %v514, 1.0
        %v531 = vadd.f32 %v515, 1.0
        %v532 = vadd.f32 %v516, 1.0
        %v533 = vadd.f32 %v517, 1.0
        %v534 = vadd.f32 %v518, 1.0
        %v535 = vadd.f32 %v519, 1.0
        %v536 = vadd.f32 %v520, 1.0
        %v537 = vadd.f32 %v521, 1.0
        %v538 = vadd.f32 %v522, 1.0
        %v539 = vadd.f32 %v523, 1.0
        %v540 = vadd.f32 %v524, 1.0
        %v541 = vadd.f32 %v525, 1.0
        %v542 = vadd.f32 %v526, 1.0
        %v543 = vadd.f32 %v527, 1.0
        %v544 = vadd.f32 %v528, 1.0
        %v545 = vadd.f32 %v529, 1.0
        %v546 = vmul.f32 %v530, 0.5
        %v547 = vmul.f32 %v531, 0.5
        %v548 = vmul.f32 %v532, 0.5
        %v549 = vmul.f32 %v533, 0.5
        %v550 = vmul.f32 %v534, 0.5
        %v551 = vmul.f32 %v535, 0.5
        %v552 = vmul.f32 %v536, 0.5
        %v553 = vmul.f32 %v537, 0.5
        %v554 = vmul.f32 %v538, 0.5
        %v555 = vmul.f32 %v539, 0.5
        %v556 = vmul.f32 %v540, 0.5
        %v557 = vmul.f32 %v541, 0.5
        %v558 = vmul.f32 %v542, 0.5
        %v559 = vmul.f32 %v543, 0.5
        %v560 = vmul.f32 %v544, 0.5
        %v561 = vmul.f32 %v545, 0.5
        %v562 = vadd.f32 %v482, 1.0
        %v563 = vadd.f32 %v483, 1.0
        %v564 = vadd.f32 %v484, 1.0
        %v565 = vadd.f32 %v485, 1.0
        %v566 = vadd.f32 %v486, 1.0
        %v567 = vadd.f32 %v487, 1.0
        %v568 = vadd.f32 %v488, 1.0
        %v569 = vadd.f32 %v489, 1.0
        %v570 = vadd.f32 %v490, 1.0
        %v571 = vadd.f32 %v491, 1.0
        %v572 = vadd.f32 %v492, 1.0
        %v573 = vadd.f32 %v493, 1.0
        %v574 = vadd.f32 %v494, 1.0
        %v575 = vadd.f32 %v495, 1.0
        %v576 = vadd.f32 %v496, 1.0
        %v577 = vadd.f32 %v497, 1.0
        %v578 = vmul.f32 %v546, %v562
        %v579 = vmul.f32 %v547, %v563
        %v580 = vmul.f32 %v548, %v564
        %v581 = vmul.f32 %v549, %v565
        %v582 = vmul.f32 %v550, %v566
        %v583 = vmul.f32 %v551, %v567
        %v584 = vmul.f32 %v552, %v568
        %v585 = vmul.f32 %v553, %v569
        %v586 = vmul.f32 %v554, %v570
        %v587 = vmul.f32 %v555, %v571
        %v588 = vmul.f32 %v556, %v572
        %v589 = vmul.f32 %v557, %v573
        %v590 = vmul.f32 %v558, %v574
        %v591 = vmul.f32 %v559, %v575
        %v592 = vmul.f32 %v560, %v576
        %v593 = vmul.f32 %v561, %v577
        %v594 = vadd.f32 %v578, %v579
        %v595 = vrot.slane %v594, 4
        %v596 = vadd.f32 %v594, %v595
        %v597 = vrot.slane %v596, 2
        %v598 = vadd.f32 %v596, %v597
        %v599 = vrot.slane %v598, 1
        %v600 = vadd.f32 %v598, %v599
        %v601 = vadd.f32 %v580, %v581
        %v602 = vrot.slane %v601, 4
        %v603 = vadd.f32 %v601, %v602
        %v604 = vrot.slane %v603, 2
        %v605 = vadd.f32 %v603, %v604
        %v606 = vrot.slane %v605, 1
        %v607 = vadd.f32 %v605, %v606
        %v608 = vadd.f32 %v582, %v583
        %v609 = vrot.slane %v608, 4
        %v610 = vadd.f32 %v608, %v609
        %v611 = vrot.slane %v610, 2
        %v612 = vadd.f32 %v610, %v611
        %v613 = vrot.slane %v612, 1
        %v614 = vadd.f32 %v612, %v613
        %v615 = vadd.f32 %v584, %v585
        %v616 = vrot.slane %v615, 4
        %v617 = vadd.f32 %v615, %v616
        %v618 = vrot.slane %v617, 2
        %v619 = vadd.f32 %v617, %v618
        %v620 = vrot.slane %v619, 1
        %v621 = vadd.f32 %v619, %v620
        %v622 = vadd.f32 %v586, %v587
        %v623 = vrot.slane %v622, 4
        %v624 = vadd.f32 %v622, %v623
        %v625 = vrot.slane %v624, 2
        %v626 = vadd.f32 %v624, %v625
        %v627 = vrot.slane %v626, 1
        %v628 = vadd.f32 %v626, %v627
        %v629 = vadd.f32 %v588, %v589
        %v630 = vrot.slane %v629, 4
        %v631 = vadd.f32 %v629, %v630
        %v632 = vrot.slane %v631, 2
        %v633 = vadd.f32 %v631, %v632
        %v634 = vrot.slane %v633, 1
        %v635 = vadd.f32 %v633, %v634
        %v636 = vadd.f32 %v590, %v591
        %v637 = vrot.slane %v636, 4
        %v638 = vadd.f32 %v636, %v637
        %v639 = vrot.slane %v638, 2
        %v640 = vadd.f32 %v638, %v639
        %v641 = vrot.slane %v640, 1
        %v642 = vadd.f32 %v640, %v641
        %v643 = vadd.f32 %v592, %v593
        %v644 = vrot.slane %v643, 4
        %v645 = vadd.f32 %v643, %v644
        %v646 = vrot.slane %v645, 2
        %v647 = vadd.f32 %v645, %v646
        %v648 = vrot.slane %v647, 1
        %v649 = vadd.f32 %v647, %v648
        %v650 = vadd.f32 %v546, %v547
        %v651 = vrot.slane %v650, 4
        %v652 = vadd.f32 %v650, %v651
        %v653 = vrot.slane %v652, 2
        %v654 = vadd.f32 %v652, %v653
        %v655 = vrot.slane %v654, 1
        %v656 = vadd.f32 %v654, %v655
        %v657 = vadd.f32 %v548, %v549
        %v658 = vrot.slane %v657, 4
        %v659 = vadd.f32 %v657, %v658
        %v660 = vrot.slane %v659, 2
        %v661 = vadd.f32 %v659, %v660
        %v662 = vrot.slane %v661, 1
        %v663 = vadd.f32 %v661, %v662
        %v664 = vadd.f32 %v550, %v551
        %v665 = vrot.slane %v664, 4
        %v666 = vadd.f32 %v664, %v665
        %v667 = vrot.slane %v666, 2
        %v668 = vadd.f32 %v666, %v667
        %v669 = vrot.slane %v668, 1
        %v670 = vadd.f32 %v668, %v669
        %v671 = vadd.f32 %v552, %v553
        %v672 = vrot.slane %v671, 4
        %v673 = vadd.f32 %v671, %v672
        %v674 = vrot.slane %v673, 2
        %v675 = vadd.f32 %v673, %v674
        %v676 = vrot.slane %v675, 1
        %v677 = vadd.f32 %v675, %v676
        %v678 = vadd.f32 %v554, %v555
        %v679 = vrot.slane %v678, 4
        %v680 = vadd.f32 %v678, %v679
        %v681 = vrot.slane %v680, 2
        %v682 = vadd.f32 %v680, %v681
        %v683 = vrot.slane %v682, 1
        %v684 = vadd.f32 %v682, %v683
        %v685 = vadd.f32 %v556, %v557
        %v686 = vrot.slane %v685, 4
        %v687 = vadd.f32 %v685, %v686
        %v688 = vrot.slane %v687, 2
        %v689 = vadd.f32 %v687, %v688
        %v690 = vrot.slane %v689, 1
        %v691 = vadd.f32 %v689, %v690
        %v692 = vadd.f32 %v558, %v559
        %v693 = vrot.slane %v692, 4
        %v694 = vadd.f32 %v692, %v693
        %v695 = vrot.slane %v694, 2
        %v696 = vadd.f32 %v694, %v695
        %v697 = vrot.slane %v696, 1
        %v698 = vadd.f32 %v696, %v697
        %v699 = vadd.f32 %v560, %v561
        %v700 = vrot.slane %v699, 4
        %v701 = vadd.f32 %v699, %v700
        %v702 = vrot.slane %v701, 2
        %v703 = vadd.f32 %v701, %v702
        %v704 = vrot.slane %v703, 1
        %v705 = vadd.f32 %v703, %v704
        %v706 = vmul.f32 %v600, %v465
        %v707 = vmul.f32 %v607, %v465
        %v708 = vmul.f32 %v614, %v465
        %v709 = vmul.f32 %v621, %v465
        %v710 = vmul.f32 %v628, %v465
        %v711 = vmul.f32 %v635, %v465
        %v712 = vmul.f32 %v642, %v465
        %v713 = vmul.f32 %v649, %v465
        %v722 = vrot.slane %v707, 7
        %vm723 = vcmask 1041409
        %v724 = vsel %vm723, %v722, %v706
        %v725 = vrot.slane %v708, 6
        %vm726 = vcmask 1042434
        %v727 = vsel %vm726, %v725, %v724
        %v728 = vrot.slane %v709, 5
        %vm729 = vcmask 1043459
        %v730 = vsel %vm729, %v728, %v727
        %v731 = vrot.slane %v710, 4
        %vm732 = vcmask 1044484
        %v733 = vsel %vm732, %v731, %v730
        %v734 = vrot.slane %v711, 3
        %vm735 = vcmask 1045509
        %v736 = vsel %vm735, %v734, %v733
        %v737 = vrot.slane %v712, 2
        %vm738 = vcmask 1046534
        %v739 = vsel %vm738, %v737, %v736
        %v740 = vrot.slane %v713, 1
        %vm741 = vcmask 1047559
        %v742 = vsel %vm741, %v740, %v739
        %744 = vadd.xlane.f32.xlu0 %v742
        %v745 = vpop.xlane.xlu0 %744
        %v754 = vsel %vm723, %v663, %v656
        %v755 = vsel %vm726, %v670, %v754
        %v756 = vsel %vm729, %v677, %v755
        %v757 = vsel %vm732, %v684, %v756
        %v758 = vsel %vm735, %v691, %v757
        %v759 = vsel %vm738, %v698, %v758
        %v760 = vsel %vm741, %v705, %v759
        %762 = vadd.xlane.f32.xlu0 %v760
        %v763 = vpop.xlane.xlu0 %762
        %vm764 = vcmp.gt.f32.partialorder %v763, 2166.6667
        %v765 = vsel %vm764, 0.0, %v745
        %v766 = vld [vmem:[%s404] sm:$0xff]
        %v767 = vld [vmem:[%s404 + $0x8] sm:$0xff]
        %v768 = vld [vmem:[%s404 + $0x10] sm:$0xff]
        %v769 = vld [vmem:[%s404 + $0x18] sm:$0xff]
        %v770 = vld [vmem:[%s404 + $0x20] sm:$0xff]
        %v771 = vld [vmem:[%s404 + $0x28] sm:$0xff]
        %v772 = vld [vmem:[%s404 + $0x30] sm:$0xff]
        %v773 = vld [vmem:[%s404 + $0x38] sm:$0xff]
        %v774 = vld [vmem:[%s404 + $0x40] sm:$0xff]
        %v775 = vld [vmem:[%s404 + $0x48] sm:$0xff]
        %v776 = vld [vmem:[%s404 + $0x50] sm:$0xff]
        %v777 = vld [vmem:[%s404 + $0x58] sm:$0xff]
        %v778 = vld [vmem:[%s404 + $0x60] sm:$0xff]
        %v779 = vld [vmem:[%s404 + $0x68] sm:$0xff]
        %v780 = vld [vmem:[%s404 + $0x70] sm:$0xff]
        %v781 = vld [vmem:[%s404 + $0x78] sm:$0xff]
        %v782 = vld [vmem:[%s413] sm:$0xff]
        %v783 = vld [vmem:[%s413 + $0x8] sm:$0xff]
        %v784 = vld [vmem:[%s413 + $0x10] sm:$0xff]
        %v785 = vld [vmem:[%s413 + $0x18] sm:$0xff]
        %v786 = vld [vmem:[%s413 + $0x20] sm:$0xff]
        %v787 = vld [vmem:[%s413 + $0x28] sm:$0xff]
        %v788 = vld [vmem:[%s413 + $0x30] sm:$0xff]
        %v789 = vld [vmem:[%s413 + $0x38] sm:$0xff]
        %v790 = vld [vmem:[%s413 + $0x40] sm:$0xff]
        %v791 = vld [vmem:[%s413 + $0x48] sm:$0xff]
        %v792 = vld [vmem:[%s413 + $0x50] sm:$0xff]
        %v793 = vld [vmem:[%s413 + $0x58] sm:$0xff]
        %v794 = vld [vmem:[%s413 + $0x60] sm:$0xff]
        %v795 = vld [vmem:[%s413 + $0x68] sm:$0xff]
        %v796 = vld [vmem:[%s413 + $0x70] sm:$0xff]
        %v797 = vld [vmem:[%s413 + $0x78] sm:$0xff]
        %v798 = vmul.f32 %v766, 0.5
        %v799 = vmul.f32 %v767, 0.5
        %v800 = vmul.f32 %v768, 0.5
        %v801 = vmul.f32 %v769, 0.5
        %v802 = vmul.f32 %v770, 0.5
        %v803 = vmul.f32 %v771, 0.5
        %v804 = vmul.f32 %v772, 0.5
        %v805 = vmul.f32 %v773, 0.5
        %v806 = vmul.f32 %v774, 0.5
        %v807 = vmul.f32 %v775, 0.5
        %v808 = vmul.f32 %v776, 0.5
        %v809 = vmul.f32 %v777, 0.5
        %v810 = vmul.f32 %v778, 0.5
        %v811 = vmul.f32 %v779, 0.5
        %v812 = vmul.f32 %v780, 0.5
        %v813 = vmul.f32 %v781, 0.5
        %v814 = vtanh.pop %v798
        %v815 = vtanh.pop %v799
        %v816 = vtanh.pop %v800
        %v817 = vtanh.pop %v801
        %v818 = vtanh.pop %v802
        %v819 = vtanh.pop %v803
        %v820 = vtanh.pop %v804
        %v821 = vtanh.pop %v805
        %v822 = vtanh.pop %v806
        %v823 = vtanh.pop %v807
        %v824 = vtanh.pop %v808
        %v825 = vtanh.pop %v809
        %v826 = vtanh.pop %v810
        %v827 = vtanh.pop %v811
        %v828 = vtanh.pop %v812
        %v829 = vtanh.pop %v813
        %v830 = vadd.f32 %v814, 1.0
        %v831 = vadd.f32 %v815, 1.0
        %v832 = vadd.f32 %v816, 1.0
        %v833 = vadd.f32 %v817, 1.0
        %v834 = vadd.f32 %v818, 1.0
        %v835 = vadd.f32 %v819, 1.0
        %v836 = vadd.f32 %v820, 1.0
        %v837 = vadd.f32 %v821, 1.0
        %v838 = vadd.f32 %v822, 1.0
        %v839 = vadd.f32 %v823, 1.0
        %v840 = vadd.f32 %v824, 1.0
        %v841 = vadd.f32 %v825, 1.0
        %v842 = vadd.f32 %v826, 1.0
        %v843 = vadd.f32 %v827, 1.0
        %v844 = vadd.f32 %v828, 1.0
        %v845 = vadd.f32 %v829, 1.0
        %v846 = vmul.f32 %v830, 0.5
        %v847 = vmul.f32 %v831, 0.5
        %v848 = vmul.f32 %v832, 0.5
        %v849 = vmul.f32 %v833, 0.5
        %v850 = vmul.f32 %v834, 0.5
        %v851 = vmul.f32 %v835, 0.5
        %v852 = vmul.f32 %v836, 0.5
        %v853 = vmul.f32 %v837, 0.5
        %v854 = vmul.f32 %v838, 0.5
        %v855 = vmul.f32 %v839, 0.5
        %v856 = vmul.f32 %v840, 0.5
        %v857 = vmul.f32 %v841, 0.5
        %v858 = vmul.f32 %v842, 0.5
        %v859 = vmul.f32 %v843, 0.5
        %v860 = vmul.f32 %v844, 0.5
        %v861 = vmul.f32 %v845, 0.5
        %v862 = vadd.f32 %v782, 1.0
        %v863 = vadd.f32 %v783, 1.0
        %v864 = vadd.f32 %v784, 1.0
        %v865 = vadd.f32 %v785, 1.0
        %v866 = vadd.f32 %v786, 1.0
        %v867 = vadd.f32 %v787, 1.0
        %v868 = vadd.f32 %v788, 1.0
        %v869 = vadd.f32 %v789, 1.0
        %v870 = vadd.f32 %v790, 1.0
        %v871 = vadd.f32 %v791, 1.0
        %v872 = vadd.f32 %v792, 1.0
        %v873 = vadd.f32 %v793, 1.0
        %v874 = vadd.f32 %v794, 1.0
        %v875 = vadd.f32 %v795, 1.0
        %v876 = vadd.f32 %v796, 1.0
        %v877 = vadd.f32 %v797, 1.0
        %v878 = vmul.f32 %v846, %v862
        %v879 = vmul.f32 %v847, %v863
        %v880 = vmul.f32 %v848, %v864
        %v881 = vmul.f32 %v849, %v865
        %v882 = vmul.f32 %v850, %v866
        %v883 = vmul.f32 %v851, %v867
        %v884 = vmul.f32 %v852, %v868
        %v885 = vmul.f32 %v853, %v869
        %v886 = vmul.f32 %v854, %v870
        %v887 = vmul.f32 %v855, %v871
        %v888 = vmul.f32 %v856, %v872
        %v889 = vmul.f32 %v857, %v873
        %v890 = vmul.f32 %v858, %v874
        %v891 = vmul.f32 %v859, %v875
        %v892 = vmul.f32 %v860, %v876
        %v893 = vmul.f32 %v861, %v877
        %v894 = vadd.f32 %v878, %v879
        %v895 = vrot.slane %v894, 4
        %v896 = vadd.f32 %v894, %v895
        %v897 = vrot.slane %v896, 2
        %v898 = vadd.f32 %v896, %v897
        %v899 = vrot.slane %v898, 1
        %v900 = vadd.f32 %v898, %v899
        %v901 = vadd.f32 %v880, %v881
        %v902 = vrot.slane %v901, 4
        %v903 = vadd.f32 %v901, %v902
        %v904 = vrot.slane %v903, 2
        %v905 = vadd.f32 %v903, %v904
        %v906 = vrot.slane %v905, 1
        %v907 = vadd.f32 %v905, %v906
        %v908 = vadd.f32 %v882, %v883
        %v909 = vrot.slane %v908, 4
        %v910 = vadd.f32 %v908, %v909
        %v911 = vrot.slane %v910, 2
        %v912 = vadd.f32 %v910, %v911
        %v913 = vrot.slane %v912, 1
        %v914 = vadd.f32 %v912, %v913
        %v915 = vadd.f32 %v884, %v885
        %v916 = vrot.slane %v915, 4
        %v917 = vadd.f32 %v915, %v916
        %v918 = vrot.slane %v917, 2
        %v919 = vadd.f32 %v917, %v918
        %v920 = vrot.slane %v919, 1
        %v921 = vadd.f32 %v919, %v920
        %v922 = vadd.f32 %v886, %v887
        %v923 = vrot.slane %v922, 4
        %v924 = vadd.f32 %v922, %v923
        %v925 = vrot.slane %v924, 2
        %v926 = vadd.f32 %v924, %v925
        %v927 = vrot.slane %v926, 1
        %v928 = vadd.f32 %v926, %v927
        %v929 = vadd.f32 %v888, %v889
        %v930 = vrot.slane %v929, 4
        %v931 = vadd.f32 %v929, %v930
        %v932 = vrot.slane %v931, 2
        %v933 = vadd.f32 %v931, %v932
        %v934 = vrot.slane %v933, 1
        %v935 = vadd.f32 %v933, %v934
        %v936 = vadd.f32 %v890, %v891
        %v937 = vrot.slane %v936, 4
        %v938 = vadd.f32 %v936, %v937
        %v939 = vrot.slane %v938, 2
        %v940 = vadd.f32 %v938, %v939
        %v941 = vrot.slane %v940, 1
        %v942 = vadd.f32 %v940, %v941
        %v943 = vadd.f32 %v892, %v893
        %v944 = vrot.slane %v943, 4
        %v945 = vadd.f32 %v943, %v944
        %v946 = vrot.slane %v945, 2
        %v947 = vadd.f32 %v945, %v946
        %v948 = vrot.slane %v947, 1
        %v949 = vadd.f32 %v947, %v948
        %v950 = vadd.f32 %v846, %v847
        %v951 = vrot.slane %v950, 4
        %v952 = vadd.f32 %v950, %v951
        %v953 = vrot.slane %v952, 2
        %v954 = vadd.f32 %v952, %v953
        %v955 = vrot.slane %v954, 1
        %v956 = vadd.f32 %v954, %v955
        %v957 = vadd.f32 %v848, %v849
        %v958 = vrot.slane %v957, 4
        %v959 = vadd.f32 %v957, %v958
        %v960 = vrot.slane %v959, 2
        %v961 = vadd.f32 %v959, %v960
        %v962 = vrot.slane %v961, 1
        %v963 = vadd.f32 %v961, %v962
        %v964 = vadd.f32 %v850, %v851
        %v965 = vrot.slane %v964, 4
        %v966 = vadd.f32 %v964, %v965
        %v967 = vrot.slane %v966, 2
        %v968 = vadd.f32 %v966, %v967
        %v969 = vrot.slane %v968, 1
        %v970 = vadd.f32 %v968, %v969
        %v971 = vadd.f32 %v852, %v853
        %v972 = vrot.slane %v971, 4
        %v973 = vadd.f32 %v971, %v972
        %v974 = vrot.slane %v973, 2
        %v975 = vadd.f32 %v973, %v974
        %v976 = vrot.slane %v975, 1
        %v977 = vadd.f32 %v975, %v976
        %v978 = vadd.f32 %v854, %v855
        %v979 = vrot.slane %v978, 4
        %v980 = vadd.f32 %v978, %v979
        %v981 = vrot.slane %v980, 2
        %v982 = vadd.f32 %v980, %v981
        %v983 = vrot.slane %v982, 1
        %v984 = vadd.f32 %v982, %v983
        %v985 = vadd.f32 %v856, %v857
        %v986 = vrot.slane %v985, 4
        %v987 = vadd.f32 %v985, %v986
        %v988 = vrot.slane %v987, 2
        %v989 = vadd.f32 %v987, %v988
        %v990 = vrot.slane %v989, 1
        %v991 = vadd.f32 %v989, %v990
        %v992 = vadd.f32 %v858, %v859
        %v993 = vrot.slane %v992, 4
        %v994 = vadd.f32 %v992, %v993
        %v995 = vrot.slane %v994, 2
        %v996 = vadd.f32 %v994, %v995
        %v997 = vrot.slane %v996, 1
        %v998 = vadd.f32 %v996, %v997
        %v999 = vadd.f32 %v860, %v861
        %v1000 = vrot.slane %v999, 4
        %v1001 = vadd.f32 %v999, %v1000
        %v1002 = vrot.slane %v1001, 2
        %v1003 = vadd.f32 %v1001, %v1002
        %v1004 = vrot.slane %v1003, 1
        %v1005 = vadd.f32 %v1003, %v1004
        %v1006 = vmul.f32 %v900, %v465
        %v1007 = vmul.f32 %v907, %v465
        %v1008 = vmul.f32 %v914, %v465
        %v1009 = vmul.f32 %v921, %v465
        %v1010 = vmul.f32 %v928, %v465
        %v1011 = vmul.f32 %v935, %v465
        %v1012 = vmul.f32 %v942, %v465
        %v1013 = vmul.f32 %v949, %v465
        %v1022 = vrot.slane %v1007, 7
        %v1023 = vsel %vm723, %v1022, %v1006
        %v1024 = vrot.slane %v1008, 6
        %v1025 = vsel %vm726, %v1024, %v1023
        %v1026 = vrot.slane %v1009, 5
        %v1027 = vsel %vm729, %v1026, %v1025
        %v1028 = vrot.slane %v1010, 4
        %v1029 = vsel %vm732, %v1028, %v1027
        %v1030 = vrot.slane %v1011, 3
        %v1031 = vsel %vm735, %v1030, %v1029
        %v1032 = vrot.slane %v1012, 2
        %v1033 = vsel %vm738, %v1032, %v1031
        %v1034 = vrot.slane %v1013, 1
        %v1035 = vsel %vm741, %v1034, %v1033
        %1037 = vadd.xlane.f32.xlu0 %v1035
        %v1038 = vpop.xlane.xlu0 %1037
        %v1047 = vsel %vm723, %v963, %v956
        %v1048 = vsel %vm726, %v970, %v1047
        %v1049 = vsel %vm729, %v977, %v1048
        %v1050 = vsel %vm732, %v984, %v1049
        %v1051 = vsel %vm735, %v991, %v1050
        %v1052 = vsel %vm738, %v998, %v1051
        %v1053 = vsel %vm741, %v1005, %v1052
        %1055 = vadd.xlane.f32.xlu0 %v1053
        %v1056 = vpop.xlane.xlu0 %1055
        %vm1057 = vcmp.gt.f32.partialorder %v1056, 2166.6667
        %v1058 = vsel %vm1057, 0.0, %v1038
        %v1059 = vsub.f32 %v765, %v1058
        %vm1060 = vcmp.ne.f32.partialorder %v1059, 0.0
        %v1061 = vsel %vm1060, %v1059, -0.001
        %1062 = vst [vmem:[%s452] sm:$0xff] %v1061
        %s1063 = sand.u32 %s149, 1
        %s1064 = scalar_lea.sflag [#allocation6], %s1063
        %s1065 = sand.u32 %s149, 1
        %s1066 = smul.addr %s1065, 8
        %s1067 = scalar_lea.vmem [#allocation12], %s1066
        // Predicated region
        $region53: #{tpu_custom_call.1} parent=35 // pred_check
          %p1068 = pneg %p159
        $region54: #{tpu_custom_call.1} parent=35 // pred_check_branch
          %1070 = sbr.rel (%p1068) target = $region56
        $region55: #{tpu_custom_call.1} parent=35 // pred_region
          %s1072 = ssub.s32 128, 128
          %1073 = vsyncadd %s1064, %s1072
          %s1074 = smul.addr %s29, 128
          %s1075 = scalar_lea.hbm %s5, %s1074
          %s1077 = sshll.u32 %s1067, 4
          %s1078 = int_to_ptr.vmem [resolvable:$true] %s1077
          %1080 = dma.vmem_to_hbm [thread:$0]  %s1078, 128, %s1075, %s1064
        $region56: #{tpu_custom_call.1} parent=35 // pred_fallthru
          _
      $region36: #{tpu_custom_call.1} parent=5 // pred_fallthru
        _
      %p1081 = scmp.le.s32.totalorder 2, %s24
      // Predicated region
      $region57: #{tpu_custom_call.1} parent=5 // pred_check
        %p1082 = pneg %p1081
      $region58: #{tpu_custom_call.1} parent=5 // pred_check_branch
        %1084 = sbr.rel (%p1082) target = $region60
      $region59: #{tpu_custom_call.1} parent=5 // pred_region
        %s1085 = ssub.s32 %s24, 2
        // Predicated region
        $region61: #{tpu_custom_call.1} parent=59 // pred_check
          %p1086 = pneg %p165
        $region62: #{tpu_custom_call.1} parent=59 // pred_check_branch
          %1088 = sbr.rel (%p1086) target = $region64
        $region63: #{tpu_custom_call.1} parent=59 // pred_region
          %s1089 = sand.u32 %s150, 1
          %s1090 = scalar_lea.sflag [#allocation6], %s1089
          %s1091 = sand.u32 %s150, 1
          %s1092 = smul.addr %s1091, 8
          %s1093 = scalar_lea.vmem [#allocation12], %s1092
          %1094 = dma.done %s1090, 128
        $region64: #{tpu_custom_call.1} parent=59 // pred_fallthru
          _
      $region60: #{tpu_custom_call.1} parent=5 // pred_fallthru
        _
    $region6: #{tpu_custom_call.1} parent=1 // loop_footer
      %s28 = sadd.s32 1, %s24
    $region7: #{tpu_custom_call.1} parent=1 // loop_footer_branch
      %23 = sbr.rel target = $region3
    $region8: #{tpu_custom_call.1} parent=1 // loop_exit
      _
    %1095 = vsyncpa [#allocation5], 1
    %s1096 = scalar_lea.sflag [#allocation5], 1
    %1097 = vsyncpa %s1096, 1
    %1098 = vsyncpa [#allocation8], 1
    %s1099 = scalar_lea.sflag [#allocation8], 1
    %1100 = vsyncpa %s1099, 1
    %1101 = vsyncpa [#allocation11], 1
    %s1102 = scalar_lea.sflag [#allocation11], 1
    %1103 = vsyncpa %s1102, 1
    %1104 = vsyncpa [#allocation6], 1
    %s1105 = scalar_lea.sflag [#allocation6], 1
    %1106 = vsyncpa %s1105, 1

</llo_original>
